<compile_context>
chip_gen: v6e
topology: v6e:2x2x1
jax: 0.10.0
libtpu: 0.0.40
codegen_flags: <defaults>
</compile_context>

<pallas_src>
import math
import functools

import jax
import jax.numpy as jnp
from jax.experimental import pallas as pl
from jax.experimental.pallas import tpu as pltpu


_VMEM_LIMIT = 48 * 1024 * 1024  # raised scoped-VMEM limit (safe on v5e/v6e/v7x)

# default tile targets (re-derived per call for small / non-divisible dims)
_TM, _TN, _TK = 256, 256, 512
_TQ, _TKV = 128, 128


def _pick_tile(dim, target):
    """Largest tile <= target (halving) that divides dim, else the full dim."""
    if dim <= target:
        return dim
    t = target
    while t >= 8:
        if dim % t == 0:
            return t
        t //= 2
    return dim


# ---------------------------------------------------------------------------
# Fused LayerNorm + matmul (+ optional exact GELU)
# ---------------------------------------------------------------------------

def _ln_matmul_kernel(x_ref, g_ref, bln_ref, w_ref, b_ref, o_ref, *, act, eps):
    # LayerNorm statistics in f32 for accuracy.
    x = x_ref[...].astype(jnp.float32)
    mean = jnp.mean(x, axis=-1, keepdims=True)
    var = jnp.mean(jnp.square(x - mean), axis=-1, keepdims=True)
    xn = (x - mean) * jax.lax.rsqrt(var + eps)
    xn = xn * g_ref[...].astype(jnp.float32) + bln_ref[...].astype(jnp.float32)
    # Feed the MXU in the weight dtype; accumulate in f32.
    y = jnp.dot(xn.astype(w_ref.dtype), w_ref[...],
                preferred_element_type=jnp.float32)
    y = y + b_ref[...].astype(jnp.float32)
    if act == "gelu":
        y = 0.5 * y * (1.0 + jax.lax.erf(y * (1.0 / math.sqrt(2.0))))
    o_ref[...] = y.astype(o_ref.dtype)


def ln_matmul(x, gamma, beta, w, b, act=None, eps=1e-5):
    """y = (LayerNorm(x) @ w + b), optional exact GELU.  x:(M,K) w:(K,N)."""
    M, K = x.shape
    N = w.shape[1]
    tm = _pick_tile(M, _TM)
    tn = _pick_tile(N, _TN)
    return pl.pallas_call(
        functools.partial(_ln_matmul_kernel, act=act, eps=eps),
        out_shape=jax.ShapeDtypeStruct((M, N), x.dtype),
        grid=(M // tm, N // tn),
        in_specs=[
            pl.BlockSpec((tm, K), lambda i, j: (i, 0)),
            pl.BlockSpec((1, K), lambda i, j: (0, 0)),
            pl.BlockSpec((1, K), lambda i, j: (0, 0)),
            pl.BlockSpec((K, tn), lambda i, j: (0, j)),
            pl.BlockSpec((1, tn), lambda i, j: (0, j)),
        ],
        out_specs=pl.BlockSpec((tm, tn), lambda i, j: (i, j)),
        compiler_params=pltpu.CompilerParams(
            dimension_semantics=("parallel", "parallel"),
            vmem_limit_bytes=_VMEM_LIMIT),
    )(x, gamma.reshape(1, K), beta.reshape(1, K), w, b.reshape(1, N))


# ---------------------------------------------------------------------------
# K-tiled matmul with fused bias (+ optional GELU) and fused residual add
# ---------------------------------------------------------------------------

def _matmul_resid_kernel(x_ref, w_ref, b_ref, r_ref, o_ref, acc_ref, *, act):
    k = pl.program_id(2)

    @pl.when(k == 0)
    def _():
        acc_ref[...] = jnp.zeros_like(acc_ref)

    acc_ref[...] += jnp.dot(x_ref[...], w_ref[...],
                            preferred_element_type=jnp.float32)

    @pl.when(k == pl.num_programs(2) - 1)
    def _():
        y = acc_ref[...] + b_ref[...].astype(jnp.float32)
        if act == "gelu":
            y = 0.5 * y * (1.0 + jax.lax.erf(y * (1.0 / math.sqrt(2.0))))
        y = y + r_ref[...].astype(jnp.float32)          # fused residual add
        o_ref[...] = y.astype(o_ref.dtype)


def matmul_residual(x, w, b, residual, act=None):
    """y = residual + act(x @ w + b).  x:(M,K) w:(K,N) residual:(M,N)."""
    M, K = x.shape
    N = w.shape[1]
    tm = _pick_tile(M, _TM)
    tn = _pick_tile(N, _TN)
    tk = _pick_tile(K, _TK)
    return pl.pallas_call(
        functools.partial(_matmul_resid_kernel, act=act),
        out_shape=jax.ShapeDtypeStruct((M, N), x.dtype),
        grid=(M // tm, N // tn, K // tk),
        in_specs=[
            pl.BlockSpec((tm, tk), lambda i, j, k: (i, k)),
            pl.BlockSpec((tk, tn), lambda i, j, k: (k, j)),
            pl.BlockSpec((1, tn), lambda i, j, k: (0, j)),
            pl.BlockSpec((tm, tn), lambda i, j, k: (i, j)),
        ],
        out_specs=pl.BlockSpec((tm, tn), lambda i, j, k: (i, j)),
        scratch_shapes=[pltpu.VMEM((tm, tn), jnp.float32)],
        compiler_params=pltpu.CompilerParams(
            dimension_semantics=("parallel", "parallel", "arbitrary"),
            vmem_limit_bytes=_VMEM_LIMIT),
    )(x, w, b.reshape(1, N), residual)


# ---------------------------------------------------------------------------
# Flash-style causal self-attention (online softmax, per batch*head)
# ---------------------------------------------------------------------------

def _flash_attn_kernel(q_ref, k_ref, v_ref, o_ref, m_sc, l_sc, acc_sc,
                       *, scale, tq, tkv):
    qi = pl.program_id(1)
    ki = pl.program_id(2)

    @pl.when(ki == 0)
    def _():
        m_sc[...] = jnp.full_like(m_sc, -jnp.inf)
        l_sc[...] = jnp.zeros_like(l_sc)
        acc_sc[...] = jnp.zeros_like(acc_sc)

    # Skip kv blocks that are entirely above the causal diagonal.
    @pl.when(ki * tkv <= qi * tq + (tq - 1))
    def _():
        q = q_ref[...]                      # (tq, Dh), input dtype
        k = k_ref[...]                      # (tkv, Dh)
        # contract on the last dim directly (no explicit transpose)
        s = jax.lax.dot_general(q, k, (((1,), (1,)), ((), ())),
                                preferred_element_type=jnp.float32) * scale
        row = qi * tq + jax.lax.broadcasted_iota(jnp.int32, (tq, tkv), 0)
        col = ki * tkv + jax.lax.broadcasted_iota(jnp.int32, (tq, tkv), 1)
        s = jnp.where(col <= row, s, -jnp.inf)

        m_prev = m_sc[...]
        m_new = jnp.maximum(m_prev, jnp.max(s, axis=-1, keepdims=True))
        alpha = jnp.exp(m_prev - m_new)
        p = jnp.exp(s - m_new)
        l_sc[...] = alpha * l_sc[...] + jnp.sum(p, axis=-1, keepdims=True)
        acc_sc[...] = alpha * acc_sc[...] + jnp.dot(
            p.astype(v_ref.dtype), v_ref[...], preferred_element_type=jnp.float32)
        m_sc[...] = m_new

    @pl.when(ki == pl.num_programs(2) - 1)
    def _():
        inv_l = pl.reciprocal(l_sc[...], approx=True)
        o_ref[...] = (acc_sc[...] * inv_l).astype(o_ref.dtype)


def flash_causal_attention(q, k, v, scale):
    """q,k,v : (B*H, S, Dh) -> (B*H, S, Dh), causal softmax attention."""
    BH, S, Dh = q.shape
    tq = _pick_tile(S, _TQ)
    tkv = _pick_tile(S, _TKV)
    return pl.pallas_call(
        functools.partial(_flash_attn_kernel, scale=scale, tq=tq, tkv=tkv),
        out_shape=jax.ShapeDtypeStruct((BH, S, Dh), q.dtype),
        grid=(BH, S // tq, S // tkv),
        in_specs=[
            pl.BlockSpec((pl.Squeezed(), tq, Dh), lambda b, qi, ki: (b, qi, 0)),
            pl.BlockSpec((pl.Squeezed(), tkv, Dh), lambda b, qi, ki: (b, ki, 0)),
            pl.BlockSpec((pl.Squeezed(), tkv, Dh), lambda b, qi, ki: (b, ki, 0)),
        ],
        out_specs=pl.BlockSpec((pl.Squeezed(), tq, Dh),
                               lambda b, qi, ki: (b, qi, 0)),
        scratch_shapes=[
            pltpu.VMEM((tq, 1), jnp.float32),   # running max m
            pltpu.VMEM((tq, 1), jnp.float32),   # running denom l
            pltpu.VMEM((tq, Dh), jnp.float32),  # output accumulator
        ],
        compiler_params=pltpu.CompilerParams(
            dimension_semantics=("parallel", "parallel", "arbitrary"),
            vmem_limit_bytes=_VMEM_LIMIT),
    )(q, k, v)


# ---------------------------------------------------------------------------
# Model glue (plain JAX: gathers, reshapes, param bookkeeping)
# ---------------------------------------------------------------------------

def block_forward(x, p, n_head):
    """One pre-LN TransformerEncoderLayer (PyTorch norm_first=True, gelu)."""
    B, S, E = x.shape
    Dh = E // n_head
    xf = x.reshape(B * S, E)

    # --- self-attention sub-block:  x = x + W_o(attn(LN1(x)))  (dropout = id)
    qkv = ln_matmul(xf, p["ln1_g"], p["ln1_b"], p["w_qkv"], p["b_qkv"])  # (B*S, 3E)
    q, k, v = jnp.split(qkv, 3, axis=-1)

    def to_heads(t):
        # TODO(synk): for Dh >= 128 the head split could be folded into the
        # attention BlockSpec index_map to avoid this HBM round-trip.
        return (t.reshape(B, S, n_head, Dh)
                 .transpose(0, 2, 1, 3)
                 .reshape(B * n_head, S, Dh))

    att = flash_causal_attention(to_heads(q), to_heads(k), to_heads(v),
                                 scale=1.0 / math.sqrt(Dh))          # (B*H, S, Dh)
    att = (att.reshape(B, n_head, S, Dh)
              .transpose(0, 2, 1, 3)
              .reshape(B * S, E))
    x1 = matmul_residual(att, p["w_o"], p["b_o"], residual=xf)       # fused residual

    # --- feed-forward sub-block:  x = x + W2(gelu(W1(LN2(x))))  (dropout = id)
    h = ln_matmul(x1, p["ln2_g"], p["ln2_b"], p["w1"], p["b1"], act="gelu")
    x2 = matmul_residual(h, p["w2"], p["b2"], residual=x1)           # fused residual
    return x2.reshape(B, S, E)


def gpt_forward(idx, params, n_head):
    B, S = idx.shape
    E = params["tok_emb"].shape[1]
    V = params["head_w"].shape[1]

    # GPTEmbedding: token gather + positional embedding (dropout = identity)
    x = params["tok_emb"][idx]                                # (B, S, E)
    x = x + params["pos_emb"][:, :S]

    for p in params["blocks"]:
        x = block_forward(x, p, n_head)

    # GPTHead: LayerNorm + Linear -> logits (fused LN + vocab matmul, N-tiled)
    xf = x.reshape(B * S, E)
    logits = ln_matmul(xf, params["lnf_g"], params["lnf_b"],
                       params["head_w"], params["head_b"])
    return logits.reshape(B, S, V)


# ---------------------------------------------------------------------------
# Deterministic parameter initialization (shapes per the PyTorch module)
# ---------------------------------------------------------------------------

def init_params(key, vocab_size, n_layer, n_embed, n_head, context_size):
    E, V, C = n_embed, vocab_size, context_size
    ks = jax.random.split(key, 3 + n_layer)

    def nrm(k, shape):
        return 0.02 * jax.random.normal(k, shape, dtype=jnp.float32)

    params = {
        "tok_emb": nrm(ks[0], (V, E)),
        "pos_emb": nrm(ks[1], (1, C, E)),
        "lnf_g": jnp.ones((E,), jnp.float32),
        "lnf_b": jnp.zeros((E,), jnp.float32),
        "head_w": nrm(ks[2], (E, V)),
        "head_b": jnp.zeros((V,), jnp.float32),
        "blocks": [],
    }
    for l in range(n_layer):
        bk = jax.random.split(ks[3 + l], 4)
        params["blocks"].append({
            "ln1_g": jnp.ones((E,), jnp.float32),
            "ln1_b": jnp.zeros((E,), jnp.float32),
            "w_qkv": nrm(bk[0], (E, 3 * E)),
            "b_qkv": jnp.zeros((3 * E,), jnp.float32),
            "w_o":   nrm(bk[1], (E, E)),
            "b_o":   jnp.zeros((E,), jnp.float32),
            "ln2_g": jnp.ones((E,), jnp.float32),
            "ln2_b": jnp.zeros((E,), jnp.float32),
            "w1":    nrm(bk[2], (E, 4 * E)),
            "b1":    jnp.zeros((4 * E,), jnp.float32),
            "w2":    nrm(bk[3], (4 * E, E)),
            "b2":    jnp.zeros((E,), jnp.float32),
        })
    return params


# ---------------------------------------------------------------------------

if __name__ == "__main__":
    vocab_size = 64
    n_layer = 2
    n_embed = 32
    n_head = 4
    context_size = 16
    batch, seq = 2, 8

    key = jax.random.PRNGKey(0)
    k_param, k_idx = jax.random.split(key)
    params = init_params(k_param, vocab_size, n_layer, n_embed, n_head, context_size)
    idx = jax.random.randint(k_idx, (batch, seq), 0, vocab_size, dtype=jnp.int32)

    logits = gpt_forward(idx, params, n_head)
    logits = jax.block_until_ready(logits)
    assert logits.shape == (batch, seq, vocab_size)
    assert bool(jnp.all(jnp.isfinite(logits)))
    print("KERNEL_OK")
</pallas_src>

<mosaic_0001>
module attributes {stable_mosaic.version = 11 : i64} {
  func.func @_ln_matmul_kernel(%arg0: i32, %arg1: i32, %arg2: memref<16x32xf32, #tpu.memory_space<vmem>>, %arg3: memref<1x32xf32, #tpu.memory_space<vmem>>, %arg4: memref<1x32xf32, #tpu.memory_space<vmem>>, %arg5: memref<32x96xf32, #tpu.memory_space<vmem>>, %arg6: memref<1x96xf32, #tpu.memory_space<vmem>>, %arg7: memref<16x96xf32, #tpu.memory_space<vmem>>) attributes {dimension_semantics = [#tpu.dimension_semantics<parallel>, #tpu.dimension_semantics<parallel>], iteration_bounds = array<i64: 1, 1>, scalar_prefetch = 0 : i64, scratch_operands = 0 : i64, tpu.core_type = #tpu.core_type<tc>, window_params = [{transform_indices = @transform_0, window_bounds = array<i64: 16, 32>}, {pipeline_mode = #tpu.pipeline_mode<synchronous>, transform_indices = @transform_1, window_bounds = array<i64: 1, 32>}, {pipeline_mode = #tpu.pipeline_mode<synchronous>, transform_indices = @transform_2, window_bounds = array<i64: 1, 32>}, {transform_indices = @transform_3, window_bounds = array<i64: 32, 96>}, {transform_indices = @transform_4, window_bounds = array<i64: 1, 96>}, {transform_indices = @transform_5, window_bounds = array<i64: 16, 96>}]} {
    %c0 = arith.constant 0 : index
    %c0_0 = arith.constant 0 : index
    %0 = vector.load %arg2[%c0, %c0_0] : memref<16x32xf32, #tpu.memory_space<vmem>>, vector<16x32xf32>
    %cst = arith.constant dense<0.000000e+00> : vector<16xf32>
    %1 = vector.multi_reduction <add>, %0, %cst [1] : vector<16x32xf32> to vector<16xf32>
    %2 = vector.shape_cast %1 : vector<16xf32> to vector<16x1xf32>
    %cst_1 = arith.constant 3.200000e+01 : f32
    %3 = vector.broadcast %cst_1 : f32 to vector<16x1xf32>
    %4 = arith.divf %2, %3 : vector<16x1xf32>
    %5 = vector.broadcast %4 : vector<16x1xf32> to vector<16x32xf32>
    %6 = arith.subf %0, %5 : vector<16x32xf32>
    %7 = arith.mulf %6, %6 : vector<16x32xf32>
    %cst_2 = arith.constant dense<0.000000e+00> : vector<16xf32>
    %8 = vector.multi_reduction <add>, %7, %cst_2 [1] : vector<16x32xf32> to vector<16xf32>
    %9 = vector.shape_cast %8 : vector<16xf32> to vector<16x1xf32>
    %cst_3 = arith.constant 3.200000e+01 : f32
    %10 = vector.broadcast %cst_3 : f32 to vector<16x1xf32>
    %11 = arith.divf %9, %10 : vector<16x1xf32>
    %12 = vector.broadcast %4 : vector<16x1xf32> to vector<16x32xf32>
    %13 = arith.subf %0, %12 : vector<16x32xf32>
    %cst_4 = arith.constant 9.99999974E-6 : f32
    %14 = vector.broadcast %cst_4 : f32 to vector<16x1xf32>
    %15 = arith.addf %11, %14 : vector<16x1xf32>
    %16 = math.rsqrt %15 : vector<16x1xf32>
    %17 = vector.broadcast %16 : vector<16x1xf32> to vector<16x32xf32>
    %18 = arith.mulf %13, %17 : vector<16x32xf32>
    %c0_5 = arith.constant 0 : index
    %c0_6 = arith.constant 0 : index
    %19 = vector.load %arg3[%c0_5, %c0_6] : memref<1x32xf32, #tpu.memory_space<vmem>>, vector<1x32xf32>
    %20 = vector.broadcast %19 : vector<1x32xf32> to vector<16x32xf32>
    %21 = arith.mulf %18, %20 : vector<16x32xf32>
    %c0_7 = arith.constant 0 : index
    %c0_8 = arith.constant 0 : index
    %22 = vector.load %arg4[%c0_7, %c0_8] : memref<1x32xf32, #tpu.memory_space<vmem>>, vector<1x32xf32>
    %23 = vector.broadcast %22 : vector<1x32xf32> to vector<16x32xf32>
    %24 = arith.addf %21, %23 : vector<16x32xf32>
    %c0_9 = arith.constant 0 : index
    %c0_10 = arith.constant 0 : index
    %25 = vector.load %arg5[%c0_9, %c0_10] : memref<32x96xf32, #tpu.memory_space<vmem>>, vector<32x96xf32>
    %cst_11 = arith.constant dense<0.000000e+00> : vector<16x96xf32>
    %26 = tpu.matmul %24, %25, %cst_11 {dimension_numbers = #tpu.dot_dimension_numbers<[1], [0], [0], [1], [0, 0, 1, 1], [], []>} : vector<16x32xf32>, vector<32x96xf32>, vector<16x96xf32> -> vector<16x96xf32>
    %c0_12 = arith.constant 0 : index
    %c0_13 = arith.constant 0 : index
    %27 = vector.load %arg6[%c0_12, %c0_13] : memref<1x96xf32, #tpu.memory_space<vmem>>, vector<1x96xf32>
    %28 = vector.broadcast %27 : vector<1x96xf32> to vector<16x96xf32>
    %29 = arith.addf %26, %28 : vector<16x96xf32>
    %c0_14 = arith.constant 0 : index
    %c0_15 = arith.constant 0 : index
    %30 = vector.load %arg7[%c0_14, %c0_15] : memref<16x96xf32, #tpu.memory_space<vmem>>, vector<16x96xf32>
    tpu.vector_store %arg7[%c0_14, %c0_15], %29 {strides = array<i32>} : memref<16x96xf32, #tpu.memory_space<vmem>>, vector<16x96xf32>,
    return
  }
  func.func @transform_0(%arg0: i32, %arg1: i32) -> (i32, i32) {
    %c0_i32 = arith.constant 0 : i32
    %c0_i32_0 = arith.constant 0 : i32
    return %arg0, %c0_i32 : i32, i32
  }
  func.func @transform_1(%arg0: i32, %arg1: i32) -> (i32, i32) {
    %c0_i32 = arith.constant 0 : i32
    %c0_i32_0 = arith.constant 0 : i32
    %c0_i32_1 = arith.constant 0 : i32
    return %c0_i32, %c0_i32_0 : i32, i32
  }
  func.func @transform_2(%arg0: i32, %arg1: i32) -> (i32, i32) {
    %c0_i32 = arith.constant 0 : i32
    %c0_i32_0 = arith.constant 0 : i32
    %c0_i32_1 = arith.constant 0 : i32
    return %c0_i32, %c0_i32_0 : i32, i32
  }
  func.func @transform_3(%arg0: i32, %arg1: i32) -> (i32, i32) {
    %c0_i32 = arith.constant 0 : i32
    %c0_i32_0 = arith.constant 0 : i32
    return %c0_i32, %arg1 : i32, i32
  }
  func.func @transform_4(%arg0: i32, %arg1: i32) -> (i32, i32) {
    %c0_i32 = arith.constant 0 : i32
    %c0_i32_0 = arith.constant 0 : i32
    return %c0_i32, %arg1 : i32, i32
  }
  func.func @transform_5(%arg0: i32, %arg1: i32) -> (i32, i32) {
    %c0_i32 = arith.constant 0 : i32
    return %arg0, %arg1 : i32, i32
  }
}

</mosaic_0001>

<llo_original>
// kernel: tpu_custom_call.1
$region0: #{tpu_custom_call.1}
  #allocation0 [shape = 'u32[]', space=smem, size = 0x4, offset = 0x4, fixed_abs, tag = 'smem constant byte address 0x4 - core index']
  #allocation1 [shape = 'u32[144,128]{1,0:T(1,128)}', space=vmem, size = 0x12000, scoped, tag = 'internal scratch']
  %s0 = inlined_call_operand.hbm [shape: f32[16,32], index: 0, kind: input, shape index: {}]
  %s1 = inlined_call_operand.vmem [shape: f32[1,32], index: 1, kind: input, shape index: {}]
  %s2 = inlined_call_operand.vmem [shape: f32[1,32], index: 2, kind: input, shape index: {}]
  %s3 = inlined_call_operand.hbm [shape: f32[32,96], index: 3, kind: input, shape index: {}]
  %s4 = inlined_call_operand.vmem [shape: f32[1,96], index: 4, kind: input, shape index: {}]
  %s5 = inlined_call_operand.hbm [shape: f32[16,96], index: 5, kind: output, shape index: {}]
  %s6 = sld [smem:[#allocation0]]
  $region38: #{tpu_custom_call.1} parent=0
    _
  %s8 = ssub.s32 1, %s6
  %s9 = scalar_select 0, %s8, %s6
  $region1: #{tpu_custom_call.1} parent=0
    #allocation2 [shape = 'u8[8192]{0}', space=vmem, size = 0x2000, scoped, tag = 'input window, operand 0, single buffered']
    #allocation3 [shape = 's32[1]{0}', space=sflag, size = 0x4, scoped, tag = 'scoped memory for tpu_custom_call.1']
    #allocation4 [shape = 's32[1]{0}', space=sflag, size = 0x4, scoped, tag = 'scoped memory for tpu_custom_call.1']
    #allocation5 [shape = 'u8[16384]{0}', space=vmem, size = 0x4000, scoped, tag = 'input window, operand 3, single buffered']
    #allocation6 [shape = 's32[1]{0}', space=sflag, size = 0x4, scoped, tag = 'scoped memory for tpu_custom_call.1']
    #allocation7 [shape = 'u8[8192]{0}', space=vmem, size = 0x2000, scoped, tag = 'output window, operand 0, single buffered']
    %10 = vsyncpa [#allocation3], 0
    %11 = vsyncpa [#allocation6], 0
    %12 = vsyncpa [#allocation4], 0
    // Predicated region
    $region2: #{tpu_custom_call.1} parent=1 // pred_check
      _
    $region3: #{tpu_custom_call.1} parent=1 // pred_check_branch
      %14 = sbr.rel (0) target = $region5
    $region4: #{tpu_custom_call.1} parent=1 // pred_region
      %s16 = ssub.s32 256, 256
      %17 = vsyncadd [#allocation3], %s16
      %s18 = sshll.u32 [#allocation2], 4
      %s19 = int_to_ptr.vmem [resolvable:$true] %s18
      %24 = dma.hbm_to_vmem [thread:$0]  %s0, 256, %s19, [#allocation3], 128, 128, 8
    $region5: #{tpu_custom_call.1} parent=1 // pred_fallthru
      _
    // Predicated region
    $region6: #{tpu_custom_call.1} parent=1 // pred_check
      _
    $region7: #{tpu_custom_call.1} parent=1 // pred_check_branch
      %26 = sbr.rel (0) target = $region9
    $region8: #{tpu_custom_call.1} parent=1 // pred_region
      _
    $region9: #{tpu_custom_call.1} parent=1 // pred_fallthru
      _
    // Predicated region
    $region10: #{tpu_custom_call.1} parent=1 // pred_check
      _
    $region11: #{tpu_custom_call.1} parent=1 // pred_check_branch
      %28 = sbr.rel (0) target = $region13
    $region12: #{tpu_custom_call.1} parent=1 // pred_region
      _
    $region13: #{tpu_custom_call.1} parent=1 // pred_fallthru
      _
    // Predicated region
    $region14: #{tpu_custom_call.1} parent=1 // pred_check
      _
    $region15: #{tpu_custom_call.1} parent=1 // pred_check_branch
      %30 = sbr.rel (0) target = $region17
    $region16: #{tpu_custom_call.1} parent=1 // pred_region
      %s32 = ssub.s32 512, 512
      %33 = vsyncadd [#allocation6], %s32
      %s34 = sshll.u32 [#allocation5], 4
      %s35 = int_to_ptr.vmem [resolvable:$true] %s34
      %40 = dma.hbm_to_vmem [thread:$0]  %s3, 512, %s35, [#allocation6], 128, 128, 8
    $region17: #{tpu_custom_call.1} parent=1 // pred_fallthru
      _
    // Predicated region
    $region18: #{tpu_custom_call.1} parent=1 // pred_check
      _
    $region19: #{tpu_custom_call.1} parent=1 // pred_check_branch
      %42 = sbr.rel (0) target = $region21
    $region20: #{tpu_custom_call.1} parent=1 // pred_region
      _
    $region21: #{tpu_custom_call.1} parent=1 // pred_fallthru
      _
    // Predicated region
    $region22: #{tpu_custom_call.1} parent=1 // pred_check
      _
    $region23: #{tpu_custom_call.1} parent=1 // pred_check_branch
      %44 = sbr.rel (0) target = $region25
    $region24: #{tpu_custom_call.1} parent=1 // pred_region
      %45 = dma.done [#allocation3], 256
    $region25: #{tpu_custom_call.1} parent=1 // pred_fallthru
      _
    // Predicated region
    $region26: #{tpu_custom_call.1} parent=1 // pred_check
      _
    $region27: #{tpu_custom_call.1} parent=1 // pred_check_branch
      %47 = sbr.rel (0) target = $region29
    $region28: #{tpu_custom_call.1} parent=1 // pred_region
      %48 = dma.done [#allocation6], 512
    $region29: #{tpu_custom_call.1} parent=1 // pred_fallthru
      _
    %v49 = vld [vmem:[#allocation2] sm:$0xff]
    %v50 = vld [vmem:[#allocation2 + $0x8] sm:$0xff]
    %vm51 = vcmask 261120
    %v52 = vsel %vm51, %v49, 0.0
    %53 = vadd.xlane.f32.xlu0 %v52
    %v54 = vpop.xlane.xlu0 %53
    %v55 = vsel %vm51, %v50, 0.0
    %56 = vadd.xlane.f32.xlu0 %v55
    %v57 = vpop.xlane.xlu0 %56
    %v58 = vrcp.pop 32.0
    %v59 = vmul.f32 %v54, %v58
    %v60 = vmul.f32 %v57, %v58
    %v61 = vsub.f32 %v49, %v59
    %v62 = vsub.f32 %v50, %v60
    %v63 = vmul.f32 %v61, %v61
    %v64 = vmul.f32 %v62, %v62
    %v65 = vsel %vm51, %v63, 0.0
    %66 = vadd.xlane.f32.xlu0 %v65
    %v67 = vpop.xlane.xlu0 %66
    %v68 = vsel %vm51, %v64, 0.0
    %69 = vadd.xlane.f32.xlu0 %v68
    %v70 = vpop.xlane.xlu0 %69
    %v71 = vmul.f32 %v67, %v58
    %v72 = vmul.f32 %v70, %v58
    %v73 = vadd.f32 %v71, 1e-05
    %v74 = vadd.f32 %v72, 1e-05
    %v75 = vrsqrt.pop %v73
    %v76 = vrsqrt.pop %v74
    %v77 = vmul.f32 %v61, %v75
    %v78 = vmul.f32 %v62, %v76
    %v79 = vld [vmem:[%s1] sm:$0x1]
    %v81 = vlaneseq
    %v82 = vshrl.u32 %v81, 7
    %v83 = vsub.s32 0, %v82
    %v84 = vrot.slane %v79, %v83
    %v86 = vmul.f32 %v77, %v84
    %v87 = vmul.f32 %v78, %v84
    %v88 = vld [vmem:[%s2] sm:$0x1]
    %v90 = vlaneseq
    %v91 = vshrl.u32 %v90, 7
    %v92 = vsub.s32 0, %v91
    %v93 = vrot.slane %v88, %v92
    %v95 = vadd.f32 %v86, %v93
    %v96 = vadd.f32 %v87, %v93
    %v97 = vld [vmem:[#allocation5] sm:$0xff]
    %v98 = vld [vmem:[#allocation5 + $0x8] sm:$0xff]
    %v99 = vld [vmem:[#allocation5 + $0x10] sm:$0xff]
    %v100 = vld [vmem:[#allocation5 + $0x18] sm:$0xff]
    %v101 = vld [vmem:[%s4] sm:$0x1]
    %v103 = vlaneseq
    %v104 = vshrl.u32 %v103, 7
    %v105 = vsub.s32 0, %v104
    %v106 = vrot.slane %v101, %v105
    %v109 = vsel %vm51, %v95, 0
    %v112 = vsel %vm51, %v96, 0
    %114 = vmatprep.subr.mxu0 0.0
    %115 = vmatpush1.msra.mxu0 0.0
    %116 = vmatprep.subr.mxu0 0.0
    %117 = vmatpush1.msra.mxu0 0.0
    %118 = vmatprep.subr.mxu0 0.0
    %119 = vmatpush1.msra.mxu0 0.0
    %120 = vmatprep.subr.mxu0 0.0
    %121 = vmatpush1.msra.mxu0 0.0
    %122 = vmatprep.subr.mxu0 0.0
    %123 = vmatpush1.msra.mxu0 0.0
    %124 = vmatprep.subr.mxu0 0.0
    %125 = vmatpush1.msra.mxu0 0.0
    %126 = vmatprep.subr.mxu0 0.0
    %127 = vmatpush1.msra.mxu0 0.0
    %128 = vmatprep.subr.mxu0 0.0
    %129 = vmatpush1.msra.mxu0 0.0
    %130 = vmatprep.subr.mxu0 0.0
    %131 = vmatpush1.msra.mxu0 0.0
    %132 = vmatprep.subr.mxu0 0.0
    %133 = vmatpush1.msra.mxu0 0.0
    %134 = vmatprep.subr.mxu0 0.0
    %135 = vmatpush1.msra.mxu0 0.0
    %136 = vmatprep.subr.mxu0 0.0
    %137 = vmatpush1.msra.mxu0 0.0
    %138 = vmatprep.subr.mxu0 0.0
    %139 = vmatpush1.msra.mxu0 %v100
    %140 = vmatprep.subr.mxu0 0.0
    %141 = vmatpush1.msra.mxu0 %v99
    %142 = vmatprep.subr.mxu0 0.0
    %143 = vmatpush1.msra.mxu0 %v98
    %144 = vmatprep.subr.mxu0 0.0
    %145 = vmatpush1.msra.mxu0 %v97
    %146 = vmatprep.subr.mxu0 0.0
    %147 = vmatpush2.msra.mxu0 0.0
    %148 = vmatprep.subr.mxu0 0.0
    %149 = vmatpush2.msra.mxu0 0.0
    %150 = vmatprep.subr.mxu0 0.0
    %151 = vmatpush2.msra.mxu0 0.0
    %152 = vmatprep.subr.mxu0 0.0
    %153 = vmatpush2.msra.mxu0 0.0
    %154 = vmatprep.subr.mxu0 0.0
    %155 = vmatpush2.msra.mxu0 0.0
    %156 = vmatprep.subr.mxu0 0.0
    %157 = vmatpush2.msra.mxu0 0.0
    %158 = vmatprep.subr.mxu0 0.0
    %159 = vmatpush2.msra.mxu0 0.0
    %160 = vmatprep.subr.mxu0 0.0
    %161 = vmatpush2.msra.mxu0 0.0
    %162 = vmatprep.subr.mxu0 0.0
    %163 = vmatpush2.msra.mxu0 0.0
    %164 = vmatprep.subr.mxu0 0.0
    %165 = vmatpush2.msra.mxu0 0.0
    %166 = vmatprep.subr.mxu0 0.0
    %167 = vmatpush2.msra.mxu0 0.0
    %168 = vmatprep.subr.mxu0 0.0
    %169 = vmatpush2.msra.mxu0 0.0
    %170 = vmatprep.subr.mxu0 0.0
    %171 = vmatpush2.msra.mxu0 0.0
    %172 = vmatprep.subr.mxu0 0.0
    %173 = vmatpush2.msra.mxu0 0.0
    %174 = vmatprep.subr.mxu0 0.0
    %175 = vmatpush2.msra.mxu0 0.0
    %176 = vmatprep.subr.mxu0 0.0
    %177 = vmatpush2.msra.mxu0 0.0
    %178 = vmatprep.mubr.f32.mxu0 0.0
    %179 = vmatmul.mubr.f32.gmra.mxu0 %v109
    %v180 = vpop.f32.mrf.mxu0
    %v181 = vadd.f32 %v106, %v180
    %v182 = vpop.f32.mrf.mxu0
    %183 = vmatprep.mubr.f32.mxu0 0.0
    %184 = vmatmul.mubr.f32.gmra.mxu0 %v112
    %v185 = vpop.f32.mrf.mxu0
    %v186 = vadd.f32 %v106, %v185
    %v187 = vpop.f32.mrf.mxu0
    %188 = vdwg.mxu0
    %vm189 = vcmask 785408
    %190 = vst.msk [vmem:[#allocation7] sm:$0xff] %vm189, %v181
    %191 = vst.msk [vmem:[#allocation7 + $0x8] sm:$0xff] %vm189, %v186
    // Predicated region
    $region30: #{tpu_custom_call.1} parent=1 // pred_check
      _
    $region31: #{tpu_custom_call.1} parent=1 // pred_check_branch
      %193 = sbr.rel (0) target = $region33
    $region32: #{tpu_custom_call.1} parent=1 // pred_region
      %s195 = ssub.s32 256, 256
      %196 = vsyncadd [#allocation4], %s195
      %s197 = sshll.u32 [#allocation7], 4
      %s198 = int_to_ptr.vmem [resolvable:$true] %s197
      %203 = dma.vmem_to_hbm [thread:$0]  %s198, 256, %s5, [#allocation4], 128, 128, 8
    $region33: #{tpu_custom_call.1} parent=1 // pred_fallthru
      _
    // Predicated region
    $region34: #{tpu_custom_call.1} parent=1 // pred_check
      _
    $region35: #{tpu_custom_call.1} parent=1 // pred_check_branch
      %205 = sbr.rel (0) target = $region37
    $region36: #{tpu_custom_call.1} parent=1 // pred_region
      %206 = dma.done [#allocation4], 256
    $region37: #{tpu_custom_call.1} parent=1 // pred_fallthru
      _
    %207 = vsyncpa [#allocation3], 1
    %208 = vsyncpa [#allocation6], 1
    %209 = vsyncpa [#allocation4], 1

</llo_original>
